<compile_context>
chip_gen: v5e
topology: v5e:2x2
jax: 0.10.0
libtpu: 0.0.40
codegen_flags: <defaults>
</compile_context>

<pallas_src>
import functools

import jax
import jax.numpy as jnp
import numpy as np
from jax.experimental import pallas as pl
from jax.experimental.pallas import tpu as pltpu


# ---------------------------------------------------------------------------
# Fused kernel
# ---------------------------------------------------------------------------
def _fused_ir_kernel(*refs, H, W, Wo, stride, tr, has_expand, use_res,
                     lane_aligned):
    # refs = (inputs..., output, scratch)
    if has_expand:
        (x_ref, w1t_ref, s1_ref, b1_ref, wdw_ref, s2_ref, b2_ref,
         w3t_ref, s3_ref, b3_ref, ml_ref, mr_ref, o_ref, hpad_ref) = refs
    else:
        (x_ref, wdw_ref, s2_ref, b2_ref, w3t_ref, s3_ref, b3_ref,
         ml_ref, mr_ref, o_ref, hpad_ref) = refs

    hidden = wdw_ref.shape[0]
    r = pl.program_id(1)
    L = tr * Wo

    # hpad layout (lane-dense): lane 0 = zero guard, lanes [1, 1+(H+2)*W) hold
    # padded rows m = 0..H+1 (padded row m == input row m-1; rows 0 and H+1
    # are the zero halo rows), last lane = zero guard.

    # --- stage 1 (once per batch element): 1x1 expand + BN + ReLU6 into the
    #     lane-dense hidden scratch.  Only the halo rows/guards are zeroed.
    @pl.when(r == 0)
    def _fill_hidden():
        zero_edge = jnp.zeros((hidden, W + 1), jnp.float32)
        hpad_ref[:, 0:W + 1] = zero_edge                  # guard + top halo row
        hpad_ref[:, 1 + (H + 1) * W:] = zero_edge         # bottom halo row + guard
        x2d = x_ref[0]                                    # (cin, H*W)
        if has_expand:
            # NOTE: for very large `hidden` consider precision=HIGHEST here.
            h2d = jnp.dot(w1t_ref[...], x2d,
                          preferred_element_type=jnp.float32)
            h2d = jnp.clip(h2d * s1_ref[...] + b1_ref[...], 0.0, 6.0)
        else:
            h2d = x2d
        hpad_ref[:, 1 + W:1 + (H + 1) * W] = h2d

    # --- stage 2: depthwise 3x3 + BN + ReLU6 for this row tile, produced as a
    #     single lane-dense (hidden, tr*Wo) value (no scratch round trip).
    wdw = wdw_ref[...]                                    # (hidden, 9)
    wcols = [jax.lax.slice(wdw, (0, k), (hidden, k + 1)) for k in range(9)]
    s2 = s2_ref[...]                                      # (hidden, 1)
    b2 = b2_ref[...]
    ml = ml_ref[...]                                      # (1, tr*Wo) left-edge mask
    mr = mr_ref[...]                                      # (1, tr*Wo) right-edge mask

    if stride == 1:
        # One contiguous lane-dense band: padded rows r*tr .. r*tr+tr+1 plus
        # one guard lane on each side; every tap (ki, kj) is a static lane
        # shift of this band (columns wrapping across rows are masked).
        start = r * tr * W
        if lane_aligned:
            start = pl.multiple_of(start, 128)
        band = hpad_ref[:, pl.ds(start, (tr + 2) * W + 2)]
        accs = []
        for kj in range(3):
            acc = jnp.zeros((hidden, L), jnp.float32)
            for ki in range(3):
                off = 1 + ki * W + (kj - 1)
                tap = jax.lax.slice(band, (0, off), (hidden, off + L))
                acc = acc + tap * wcols[ki * 3 + kj]
            accs.append(acc)
        dw = accs[1] + accs[0] * ml + accs[2] * mr
    else:
        # stride == 2: per-output-row strided taps (correct, not hot in tests).
        rows = []
        for li in range(tr):
            accs3 = [jnp.zeros((hidden, Wo), jnp.float32) for _ in range(3)]
            for ki in range(3):
                m = (r * tr + li) * stride + ki           # padded row index
                band_row = hpad_ref[:, pl.ds(m * W, W + 2)]   # cols -1..W
                for kj in range(3):
                    tap = jax.lax.slice(
                        band_row, (0, kj),
                        (hidden, kj + (Wo - 1) * stride + 1), (1, stride))
                    accs3[kj] = accs3[kj] + tap * wcols[ki * 3 + kj]
            mlr = jax.lax.slice(ml, (0, li * Wo), (1, (li + 1) * Wo))
            mrr = jax.lax.slice(mr, (0, li * Wo), (1, (li + 1) * Wo))
            rows.append(accs3[1] + accs3[0] * mlr + accs3[2] * mrr)
        dw = jnp.concatenate(rows, axis=1)

    dw = jnp.clip(dw * s2 + b2, 0.0, 6.0)                 # (hidden, tr*Wo)

    # --- stage 3: 1x1 project + BN (+ residual), lane-dense output store.
    out = jnp.dot(w3t_ref[...], dw, preferred_element_type=jnp.float32)
    out = out * s3_ref[...] + b3_ref[...]                 # (oup, tr*Wo)
    if use_res:                                           # stride==1 -> Wo == W
        rs = r * tr * W
        if lane_aligned:
            rs = pl.multiple_of(rs, 128)
        out = out + x_ref[0, :, pl.ds(rs, L)]
    o_ref[0] = out


# ---------------------------------------------------------------------------
# Tiling / VMEM sizing helpers
# ---------------------------------------------------------------------------
def _vmem_estimate(cin, hidden, oup, H, W, Wo, tr):
    f = 4  # f32 bytes
    hpad = hidden * ((H + 2) * W + 2) * f                 # persistent scratch
    blocks = 2 * (cin * H * W + oup * tr * Wo) * f        # double-buffered I/O
    weights = 2 * (hidden * cin + hidden * 9 + oup * hidden
                   + 3 * hidden + 3 * oup + 2 * tr * Wo) * f
    work = (hidden * ((tr + 2) * W + 2)
            + 5 * hidden * tr * Wo + 2 * oup * tr * Wo) * f
    return hpad + blocks + weights + work


def _pick_row_tile(Ho, Wo, est_fn, budget):
    # Largest tr dividing Ho with a lane-dense (multiple of 128) output block
    # that fits the VMEM budget; fall back to the largest divisor that fits.
    best = None
    for t in range(1, Ho + 1):
        if Ho % t == 0 and (t * Wo) % 128 == 0 and est_fn(t) <= budget:
            best = t
    if best is None:
        for t in range(1, Ho + 1):
            if Ho % t == 0 and est_fn(t) <= budget:
                best = t
    return best if best is not None else 1


# ---------------------------------------------------------------------------
# Wrapper
# ---------------------------------------------------------------------------
def inverted_residual_forward(x_nchw, params, *, stride, expand_ratio, inp, oup):
    n, cin, H, W = x_nchw.shape
    assert cin == inp and stride in (1, 2)
    hidden = int(round(inp * expand_ratio))
    has_expand = expand_ratio != 1
    use_res = (stride == 1) and (inp == oup)
    Ho = (H + 2 - 3) // stride + 1
    Wo = (W + 2 - 3) // stride + 1

    budget = 28 * 1024 * 1024
    est_fn = lambda t: _vmem_estimate(cin, hidden, oup, H, W, Wo, t)
    tr = _pick_row_tile(Ho, Wo, est_fn, budget)
    n_row_tiles = Ho // tr
    lane_aligned = (tr * W) % 128 == 0

    # Free (metadata-only) reshape: channels-first, spatial flattened on lanes.
    x2d = x_nchw.reshape(n, cin, H * W)

    # Edge masks for the depthwise column padding: tap kj=0 needs input col
    # stride*j-1 >= 0, tap kj=2 needs stride*j+1 <= W-1.  Tiled over tr rows.
    j = np.arange(Wo)
    ml_row = (stride * j - 1 >= 0).astype(np.float32)
    mr_row = (stride * j + 1 <= W - 1).astype(np.float32)
    mask_l = jnp.asarray(np.tile(ml_row, tr).reshape(1, tr * Wo))
    mask_r = jnp.asarray(np.tile(mr_row, tr).reshape(1, tr * Wo))

    def col(v):                              # per-channel BN params as (C, 1)
        return v.reshape(-1, 1)

    inputs = [x2d]
    in_specs = [pl.BlockSpec((1, cin, H * W), lambda b, r: (b, 0, 0))]
    if has_expand:
        inputs += [params["w1t"], col(params["s1"]), col(params["b1"])]
        in_specs += [
            pl.BlockSpec((hidden, cin), lambda b, r: (0, 0)),
            pl.BlockSpec((hidden, 1), lambda b, r: (0, 0)),
            pl.BlockSpec((hidden, 1), lambda b, r: (0, 0)),
        ]
    inputs += [params["wdw"], col(params["s2"]), col(params["b2"]),
               params["w3t"], col(params["s3"]), col(params["b3"]),
               mask_l, mask_r]
    in_specs += [
        pl.BlockSpec((hidden, 9), lambda b, r: (0, 0)),
        pl.BlockSpec((hidden, 1), lambda b, r: (0, 0)),
        pl.BlockSpec((hidden, 1), lambda b, r: (0, 0)),
        pl.BlockSpec((oup, hidden), lambda b, r: (0, 0)),
        pl.BlockSpec((oup, 1), lambda b, r: (0, 0)),
        pl.BlockSpec((oup, 1), lambda b, r: (0, 0)),
        pl.BlockSpec((1, tr * Wo), lambda b, r: (0, 0)),
        pl.BlockSpec((1, tr * Wo), lambda b, r: (0, 0)),
    ]

    kernel = functools.partial(
        _fused_ir_kernel, H=H, W=W, Wo=Wo, stride=stride, tr=tr,
        has_expand=has_expand, use_res=use_res, lane_aligned=lane_aligned)

    est = est_fn(tr)
    vmem_limit = int(min(48 * 1024 * 1024, max(16 * 1024 * 1024, 2 * est)))

    out2d = pl.pallas_call(
        kernel,
        out_shape=jax.ShapeDtypeStruct((n, oup, Ho * Wo), jnp.float32),
        grid=(n, n_row_tiles),
        in_specs=in_specs,
        out_specs=pl.BlockSpec((1, oup, tr * Wo), lambda b, r: (b, 0, r)),
        scratch_shapes=[
            pltpu.VMEM((hidden, (H + 2) * W + 2), jnp.float32),  # padded hidden
        ],
        compiler_params=pltpu.CompilerParams(
            dimension_semantics=("parallel", "arbitrary"),
            vmem_limit_bytes=vmem_limit,
        ),
    )(*inputs)
    return out2d.reshape(n, oup, Ho, Wo)


# ---------------------------------------------------------------------------
# Deterministic parameters (BN folded, eval-mode) in the kernel's layout
# ---------------------------------------------------------------------------
def make_params(key, inp, oup, expand_ratio):
    hidden = int(round(inp * expand_ratio))
    eps = 1e-5
    ks = jax.random.split(key, 15)

    def bn_fold(k0, k1, k2, k3, c):
        gamma = 1.0 + 0.1 * jax.random.normal(ks[k0], (c,), jnp.float32)
        beta = 0.1 * jax.random.normal(ks[k1], (c,), jnp.float32)
        mean = 0.05 * jax.random.normal(ks[k2], (c,), jnp.float32)
        var = 1.0 + 0.1 * jnp.abs(jax.random.normal(ks[k3], (c,), jnp.float32))
        s = gamma / jnp.sqrt(var + eps)
        return s, beta - mean * s

    # w1t : (hidden, inp)  -- 1x1 expand, h = w1t @ x
    # wdw : (hidden, 9)    -- 3x3 depthwise, tap (ki, kj) at column ki*3+kj
    # w3t : (oup, hidden)  -- 1x1 project
    w1t = 0.3 * jax.random.normal(ks[0], (hidden, inp), jnp.float32)
    s1, b1 = bn_fold(1, 2, 3, 4, hidden)
    wdw = 0.3 * jax.random.normal(ks[5], (hidden, 9), jnp.float32)
    s2, b2 = bn_fold(6, 7, 8, 9, hidden)
    w3t = 0.3 * jax.random.normal(ks[10], (oup, hidden), jnp.float32)
    s3, b3 = bn_fold(11, 12, 13, 14, oup)
    return dict(w1t=w1t, s1=s1, b1=b1, wdw=wdw, s2=s2, b2=b2,
                w3t=w3t, s3=s3, b3=b3)


# ---------------------------------------------------------------------------
# Pure-JAX reference (mirrors PyTorch forward, eval-mode BN folded)
# ---------------------------------------------------------------------------
def reference(x_nchw, params, *, stride, expand_ratio, inp, oup):
    def bn(y, s, b):
        return y * s[None, :, None, None] + b[None, :, None, None]

    x = x_nchw
    h = x
    if expand_ratio != 1:
        h = jnp.einsum('nchw,dc->ndhw', x, params["w1t"])
        h = jnp.clip(bn(h, params["s1"], params["b1"]), 0.0, 6.0)
    c = h.shape[1]
    wdw = params["wdw"].reshape(c, 3, 3)[:, None, :, :]        # (C,1,3,3) OIHW
    h = jax.lax.conv_general_dilated(
        h, wdw, (stride, stride), ((1, 1), (1, 1)),
        feature_group_count=c,
        dimension_numbers=('NCHW', 'OIHW', 'NCHW'))
    h = jnp.clip(bn(h, params["s2"], params["b2"]), 0.0, 6.0)
    h = jnp.einsum('ndhw,od->nohw', h, params["w3t"])
    h = bn(h, params["s3"], params["b3"])
    if stride == 1 and inp == oup:
        h = h + x
    return h


# ---------------------------------------------------------------------------
if __name__ == "__main__":
    # batch=2, inp=oup=4, spatial=16x16, stride=1, expand_ratio=4
    # (hidden_dim=16, residual connection active).
    N, INP, OUP, H, W = 2, 4, 4, 16, 16
    STRIDE, EXPAND = 1, 4

    key = jax.random.PRNGKey(0)
    k_x, k_p = jax.random.split(key)
    x = jax.random.normal(k_x, (N, INP, H, W), jnp.float32)
    params = make_params(k_p, INP, OUP, EXPAND)

    out = inverted_residual_forward(
        x, params, stride=STRIDE, expand_ratio=EXPAND, inp=INP, oup=OUP)
    out = jax.block_until_ready(out)

    ref = jax.block_until_ready(
        reference(x, params, stride=STRIDE, expand_ratio=EXPAND,
                  inp=INP, oup=OUP))

    assert out.shape == (N, OUP, H, W), out.shape
    np.testing.assert_allclose(np.asarray(out), np.asarray(ref),
                               rtol=1e-4, atol=1e-4)
    print("KERNEL_OK")
</pallas_src>

<mosaic_0001>
module attributes {stable_mosaic.version = 11 : i64} {
  func.func @_fused_ir_kernel(%arg0: i32, %arg1: i32, %arg2: memref<1x4x256xf32, #tpu.memory_space<vmem>>, %arg3: memref<16x4xf32, #tpu.memory_space<vmem>>, %arg4: memref<16x1xf32, #tpu.memory_space<vmem>>, %arg5: memref<16x1xf32, #tpu.memory_space<vmem>>, %arg6: memref<16x9xf32, #tpu.memory_space<vmem>>, %arg7: memref<16x1xf32, #tpu.memory_space<vmem>>, %arg8: memref<16x1xf32, #tpu.memory_space<vmem>>, %arg9: memref<4x16xf32, #tpu.memory_space<vmem>>, %arg10: memref<4x1xf32, #tpu.memory_space<vmem>>, %arg11: memref<4x1xf32, #tpu.memory_space<vmem>>, %arg12: memref<1x256xf32, #tpu.memory_space<vmem>>, %arg13: memref<1x256xf32, #tpu.memory_space<vmem>>, %arg14: memref<1x4x256xf32, #tpu.memory_space<vmem>>, %arg15: memref<16x290xf32, #tpu.memory_space<vmem>>) attributes {dimension_semantics = [#tpu.dimension_semantics<parallel>, #tpu.dimension_semantics<arbitrary>], iteration_bounds = array<i64: 2, 1>, scalar_prefetch = 0 : i64, scratch_operands = 1 : i64, tpu.core_type = #tpu.core_type<tc>, window_params = [{transform_indices = @transform_0, window_bounds = array<i64: 1, 4, 256>}, {pipeline_mode = #tpu.pipeline_mode<synchronous>, transform_indices = @transform_1, window_bounds = array<i64: 16, 4>}, {pipeline_mode = #tpu.pipeline_mode<synchronous>, transform_indices = @transform_2, window_bounds = array<i64: 16, 1>}, {pipeline_mode = #tpu.pipeline_mode<synchronous>, transform_indices = @transform_3, window_bounds = array<i64: 16, 1>}, {pipeline_mode = #tpu.pipeline_mode<synchronous>, transform_indices = @transform_4, window_bounds = array<i64: 16, 9>}, {pipeline_mode = #tpu.pipeline_mode<synchronous>, transform_indices = @transform_5, window_bounds = array<i64: 16, 1>}, {pipeline_mode = #tpu.pipeline_mode<synchronous>, transform_indices = @transform_6, window_bounds = array<i64: 16, 1>}, {pipeline_mode = #tpu.pipeline_mode<synchronous>, transform_indices = @transform_7, window_bounds = array<i64: 4, 16>}, {pipeline_mode = #tpu.pipeline_mode<synchronous>, transform_indices = @transform_8, window_bounds = array<i64: 4, 1>}, {pipeline_mode = #tpu.pipeline_mode<synchronous>, transform_indices = @transform_9, window_bounds = array<i64: 4, 1>}, {pipeline_mode = #tpu.pipeline_mode<synchronous>, transform_indices = @transform_10, window_bounds = array<i64: 1, 256>}, {pipeline_mode = #tpu.pipeline_mode<synchronous>, transform_indices = @transform_11, window_bounds = array<i64: 1, 256>}, {transform_indices = @transform_12, window_bounds = array<i64: 1, 4, 256>}]} {
    %c0_i32 = arith.constant 0 : i32
    %0 = arith.cmpi eq, %arg1, %c0_i32 : i32
    %1 = arith.extui %0 : i1 to i32
    %c0_i32_0 = arith.constant 0 : i32
    %2 = arith.cmpi ne, %1, %c0_i32_0 : i32
    scf.if %2 {
      %cst_30 = arith.constant 0.000000e+00 : f32
      %93 = vector.broadcast %cst_30 : f32 to vector<16x17xf32>
      %c0_31 = arith.constant 0 : index
      %c0_32 = arith.constant 0 : index
      %94 = vector.load %arg15[%c0_31, %c0_32] : memref<16x290xf32, #tpu.memory_space<vmem>>, vector<16x17xf32>
      tpu.vector_store %arg15[%c0_31, %c0_32], %93 {strides = array<i32>} : memref<16x290xf32, #tpu.memory_space<vmem>>, vector<16x17xf32>,
      %c0_33 = arith.constant 0 : index
      %c273 = arith.constant 273 : index
      %95 = vector.load %arg15[%c0_33, %c273] : memref<16x290xf32, #tpu.memory_space<vmem>>, vector<16x17xf32>
      tpu.vector_store %arg15[%c0_33, %c273], %93 {strides = array<i32>} : memref<16x290xf32, #tpu.memory_space<vmem>>, vector<16x17xf32>,
      %c0_34 = arith.constant 0 : index
      %c0_35 = arith.constant 0 : index
      %c0_36 = arith.constant 0 : index
      %96 = vector.load %arg2[%c0_34, %c0_35, %c0_36] : memref<1x4x256xf32, #tpu.memory_space<vmem>>, vector<1x4x256xf32>
      %97 = vector.shape_cast %96 : vector<1x4x256xf32> to vector<4x256xf32>
      %c0_37 = arith.constant 0 : index
      %c0_38 = arith.constant 0 : index
      %98 = vector.load %arg3[%c0_37, %c0_38] : memref<16x4xf32, #tpu.memory_space<vmem>>, vector<16x4xf32>
      %cst_39 = arith.constant dense<0.000000e+00> : vector<16x256xf32>
      %99 = tpu.matmul %98, %97, %cst_39 {dimension_numbers = #tpu.dot_dimension_numbers<[1], [0], [0], [1], [0, 0, 1, 1], [], []>} : vector<16x4xf32>, vector<4x256xf32>, vector<16x256xf32> -> vector<16x256xf32>
      %c0_40 = arith.constant 0 : index
      %c0_41 = arith.constant 0 : index
      %100 = vector.load %arg4[%c0_40, %c0_41] : memref<16x1xf32, #tpu.memory_space<vmem>>, vector<16x1xf32>
      %101 = vector.broadcast %100 : vector<16x1xf32> to vector<16x256xf32>
      %102 = arith.mulf %99, %101 : vector<16x256xf32>
      %c0_42 = arith.constant 0 : index
      %c0_43 = arith.constant 0 : index
      %103 = vector.load %arg5[%c0_42, %c0_43] : memref<16x1xf32, #tpu.memory_space<vmem>>, vector<16x1xf32>
      %104 = vector.broadcast %103 : vector<16x1xf32> to vector<16x256xf32>
      %105 = arith.addf %102, %104 : vector<16x256xf32>
      %cst_44 = arith.constant 0.000000e+00 : f32
      %cst_45 = arith.constant 6.000000e+00 : f32
      %106 = vector.broadcast %cst_44 : f32 to vector<16x256xf32>
      %107 = arith.maximumf %106, %105 : vector<16x256xf32>
      %108 = vector.broadcast %cst_45 : f32 to vector<16x256xf32>
      %109 = arith.minimumf %108, %107 : vector<16x256xf32>
      %c0_46 = arith.constant 0 : index
      %c17 = arith.constant 17 : index
      %110 = vector.load %arg15[%c0_46, %c17] : memref<16x290xf32, #tpu.memory_space<vmem>>, vector<16x256xf32>
      tpu.vector_store %arg15[%c0_46, %c17], %109 {strides = array<i32>} : memref<16x290xf32, #tpu.memory_space<vmem>>, vector<16x256xf32>,
    } else {
    }
    %c0 = arith.constant 0 : index
    %c0_1 = arith.constant 0 : index
    %3 = vector.load %arg6[%c0, %c0_1] : memref<16x9xf32, #tpu.memory_space<vmem>>, vector<16x9xf32>
    %4 = vector.extract_strided_slice %3 {offsets = [0, 0], sizes = [16, 1], strides = [1, 1]} : vector<16x9xf32> to vector<16x1xf32>
    %5 = vector.extract_strided_slice %3 {offsets = [0, 1], sizes = [16, 1], strides = [1, 1]} : vector<16x9xf32> to vector<16x1xf32>
    %6 = vector.extract_strided_slice %3 {offsets = [0, 2], sizes = [16, 1], strides = [1, 1]} : vector<16x9xf32> to vector<16x1xf32>
    %7 = vector.extract_strided_slice %3 {offsets = [0, 3], sizes = [16, 1], strides = [1, 1]} : vector<16x9xf32> to vector<16x1xf32>
    %8 = vector.extract_strided_slice %3 {offsets = [0, 4], sizes = [16, 1], strides = [1, 1]} : vector<16x9xf32> to vector<16x1xf32>
    %9 = vector.extract_strided_slice %3 {offsets = [0, 5], sizes = [16, 1], strides = [1, 1]} : vector<16x9xf32> to vector<16x1xf32>
    %10 = vector.extract_strided_slice %3 {offsets = [0, 6], sizes = [16, 1], strides = [1, 1]} : vector<16x9xf32> to vector<16x1xf32>
    %11 = vector.extract_strided_slice %3 {offsets = [0, 7], sizes = [16, 1], strides = [1, 1]} : vector<16x9xf32> to vector<16x1xf32>
    %12 = vector.extract_strided_slice %3 {offsets = [0, 8], sizes = [16, 1], strides = [1, 1]} : vector<16x9xf32> to vector<16x1xf32>
    %c0_2 = arith.constant 0 : index
    %c0_3 = arith.constant 0 : index
    %13 = vector.load %arg7[%c0_2, %c0_3] : memref<16x1xf32, #tpu.memory_space<vmem>>, vector<16x1xf32>
    %c0_4 = arith.constant 0 : index
    %c0_5 = arith.constant 0 : index
    %14 = vector.load %arg8[%c0_4, %c0_5] : memref<16x1xf32, #tpu.memory_space<vmem>>, vector<16x1xf32>
    %c0_6 = arith.constant 0 : index
    %c0_7 = arith.constant 0 : index
    %15 = vector.load %arg12[%c0_6, %c0_7] : memref<1x256xf32, #tpu.memory_space<vmem>>, vector<1x256xf32>
    %c0_8 = arith.constant 0 : index
    %c0_9 = arith.constant 0 : index
    %16 = vector.load %arg13[%c0_8, %c0_9] : memref<1x256xf32, #tpu.memory_space<vmem>>, vector<1x256xf32>
    %c16_i32 = arith.constant 16 : i32
    %17 = arith.muli %arg1, %c16_i32 : i32
    %c16_i32_10 = arith.constant 16 : i32
    %18 = arith.muli %17, %c16_i32_10 : i32
    %19 = tpu.assume_multiple %18, 128 : i32
    %c0_11 = arith.constant 0 : index
    %20 = arith.index_cast %19 : i32 to index
    %21 = vector.load %arg15[%c0_11, %20] : memref<16x290xf32, #tpu.memory_space<vmem>>, vector<16x290xf32>
    %cst = arith.constant 0.000000e+00 : f32
    %22 = vector.broadcast %cst : f32 to vector<16x256xf32>
    %23 = vector.extract_strided_slice %21 {offsets = [0, 0], sizes = [16, 256], strides = [1, 1]} : vector<16x290xf32> to vector<16x256xf32>
    %24 = vector.broadcast %4 : vector<16x1xf32> to vector<16x256xf32>
    %25 = arith.mulf %23, %24 : vector<16x256xf32>
    %26 = arith.addf %22, %25 : vector<16x256xf32>
    %27 = vector.extract_strided_slice %21 {offsets = [0, 16], sizes = [16, 256], strides = [1, 1]} : vector<16x290xf32> to vector<16x256xf32>
    %28 = vector.broadcast %7 : vector<16x1xf32> to vector<16x256xf32>
    %29 = arith.mulf %27, %28 : vector<16x256xf32>
    %30 = arith.addf %26, %29 : vector<16x256xf32>
    %31 = vector.extract_strided_slice %21 {offsets = [0, 32], sizes = [16, 256], strides = [1, 1]} : vector<16x290xf32> to vector<16x256xf32>
    %32 = vector.broadcast %10 : vector<16x1xf32> to vector<16x256xf32>
    %33 = arith.mulf %31, %32 : vector<16x256xf32>
    %34 = arith.addf %30, %33 : vector<16x256xf32>
    %cst_12 = arith.constant 0.000000e+00 : f32
    %35 = vector.broadcast %cst_12 : f32 to vector<16x256xf32>
    %36 = vector.extract_strided_slice %21 {offsets = [0, 1], sizes = [16, 256], strides = [1, 1]} : vector<16x290xf32> to vector<16x256xf32>
    %37 = vector.broadcast %5 : vector<16x1xf32> to vector<16x256xf32>
    %38 = arith.mulf %36, %37 : vector<16x256xf32>
    %39 = arith.addf %35, %38 : vector<16x256xf32>
    %40 = vector.extract_strided_slice %21 {offsets = [0, 17], sizes = [16, 256], strides = [1, 1]} : vector<16x290xf32> to vector<16x256xf32>
    %41 = vector.broadcast %8 : vector<16x1xf32> to vector<16x256xf32>
    %42 = arith.mulf %40, %41 : vector<16x256xf32>
    %43 = arith.addf %39, %42 : vector<16x256xf32>
    %44 = vector.extract_strided_slice %21 {offsets = [0, 33], sizes = [16, 256], strides = [1, 1]} : vector<16x290xf32> to vector<16x256xf32>
    %45 = vector.broadcast %11 : vector<16x1xf32> to vector<16x256xf32>
    %46 = arith.mulf %44, %45 : vector<16x256xf32>
    %47 = arith.addf %43, %46 : vector<16x256xf32>
    %cst_13 = arith.constant 0.000000e+00 : f32
    %48 = vector.broadcast %cst_13 : f32 to vector<16x256xf32>
    %49 = vector.extract_strided_slice %21 {offsets = [0, 2], sizes = [16, 256], strides = [1, 1]} : vector<16x290xf32> to vector<16x256xf32>
    %50 = vector.broadcast %6 : vector<16x1xf32> to vector<16x256xf32>
    %51 = arith.mulf %49, %50 : vector<16x256xf32>
    %52 = arith.addf %48, %51 : vector<16x256xf32>
    %53 = vector.extract_strided_slice %21 {offsets = [0, 18], sizes = [16, 256], strides = [1, 1]} : vector<16x290xf32> to vector<16x256xf32>
    %54 = vector.broadcast %9 : vector<16x1xf32> to vector<16x256xf32>
    %55 = arith.mulf %53, %54 : vector<16x256xf32>
    %56 = arith.addf %52, %55 : vector<16x256xf32>
    %57 = vector.extract_strided_slice %21 {offsets = [0, 34], sizes = [16, 256], strides = [1, 1]} : vector<16x290xf32> to vector<16x256xf32>
    %58 = vector.broadcast %12 : vector<16x1xf32> to vector<16x256xf32>
    %59 = arith.mulf %57, %58 : vector<16x256xf32>
    %60 = arith.addf %56, %59 : vector<16x256xf32>
    %61 = vector.broadcast %15 : vector<1x256xf32> to vector<16x256xf32>
    %62 = arith.mulf %34, %61 : vector<16x256xf32>
    %63 = arith.addf %47, %62 : vector<16x256xf32>
    %64 = vector.broadcast %16 : vector<1x256xf32> to vector<16x256xf32>
    %65 = arith.mulf %60, %64 : vector<16x256xf32>
    %66 = arith.addf %63, %65 : vector<16x256xf32>
    %67 = vector.broadcast %13 : vector<16x1xf32> to vector<16x256xf32>
    %68 = arith.mulf %66, %67 : vector<16x256xf32>
    %69 = vector.broadcast %14 : vector<16x1xf32> to vector<16x256xf32>
    %70 = arith.addf %68, %69 : vector<16x256xf32>
    %cst_14 = arith.constant 0.000000e+00 : f32
    %cst_15 = arith.constant 6.000000e+00 : f32
    %71 = vector.broadcast %cst_14 : f32 to vector<16x256xf32>
    %72 = arith.maximumf %71, %70 : vector<16x256xf32>
    %73 = vector.broadcast %cst_15 : f32 to vector<16x256xf32>
    %74 = arith.minimumf %73, %72 : vector<16x256xf32>
    %c0_16 = arith.constant 0 : index
    %c0_17 = arith.constant 0 : index
    %75 = vector.load %arg9[%c0_16, %c0_17] : memref<4x16xf32, #tpu.memory_space<vmem>>, vector<4x16xf32>
    %cst_18 = arith.constant dense<0.000000e+00> : vector<4x256xf32>
    %76 = tpu.matmul %75, %74, %cst_18 {dimension_numbers = #tpu.dot_dimension_numbers<[1], [0], [0], [1], [0, 0, 1, 1], [], []>} : vector<4x16xf32>, vector<16x256xf32>, vector<4x256xf32> -> vector<4x256xf32>
    %c0_19 = arith.constant 0 : index
    %c0_20 = arith.constant 0 : index
    %77 = vector.load %arg10[%c0_19, %c0_20] : memref<4x1xf32, #tpu.memory_space<vmem>>, vector<4x1xf32>
    %78 = vector.broadcast %77 : vector<4x1xf32> to vector<4x256xf32>
    %79 = arith.mulf %76, %78 : vector<4x256xf32>
    %c0_21 = arith.constant 0 : index
    %c0_22 = arith.constant 0 : index
    %80 = vector.load %arg11[%c0_21, %c0_22] : memref<4x1xf32, #tpu.memory_space<vmem>>, vector<4x1xf32>
    %81 = vector.broadcast %80 : vector<4x1xf32> to vector<4x256xf32>
    %82 = arith.addf %79, %81 : vector<4x256xf32>
    %c16_i32_23 = arith.constant 16 : i32
    %83 = arith.muli %arg1, %c16_i32_23 : i32
    %c16_i32_24 = arith.constant 16 : i32
    %84 = arith.muli %83, %c16_i32_24 : i32
    %85 = tpu.assume_multiple %84, 128 : i32
    %c0_25 = arith.constant 0 : index
    %c0_26 = arith.constant 0 : index
    %86 = arith.index_cast %85 : i32 to index
    %87 = vector.load %arg2[%c0_25, %c0_26, %86] : memref<1x4x256xf32, #tpu.memory_space<vmem>>, vector<1x4x256xf32>
    %88 = vector.shape_cast %87 : vector<1x4x256xf32> to vector<4x256xf32>
    %89 = arith.addf %82, %88 : vector<4x256xf32>
    %c0_27 = arith.constant 0 : index
    %c0_28 = arith.constant 0 : index
    %c0_29 = arith.constant 0 : index
    %90 = vector.load %arg14[%c0_27, %c0_28, %c0_29] : memref<1x4x256xf32, #tpu.memory_space<vmem>>, vector<1x4x256xf32>
    %91 = vector.shape_cast %90 : vector<1x4x256xf32> to vector<4x256xf32>
    %92 = vector.shape_cast %89 : vector<4x256xf32> to vector<1x4x256xf32>
    tpu.vector_store %arg14[%c0_27, %c0_28, %c0_29], %92 {strides = array<i32>} : memref<1x4x256xf32, #tpu.memory_space<vmem>>, vector<1x4x256xf32>,
    return
  }
  func.func @transform_0(%arg0: i32, %arg1: i32) -> (i32, i32, i32) {
    %c0_i32 = arith.constant 0 : i32
    %c0_i32_0 = arith.constant 0 : i32
    %c0_i32_1 = arith.constant 0 : i32
    return %arg0, %c0_i32, %c0_i32_0 : i32, i32, i32
  }
  func.func @transform_1(%arg0: i32, %arg1: i32) -> (i32, i32) {
    %c0_i32 = arith.constant 0 : i32
    %c0_i32_0 = arith.constant 0 : i32
    %c0_i32_1 = arith.constant 0 : i32
    return %c0_i32, %c0_i32_0 : i32, i32
  }
  func.func @transform_2(%arg0: i32, %arg1: i32) -> (i32, i32) {
    %c0_i32 = arith.constant 0 : i32
    %c0_i32_0 = arith.constant 0 : i32
    %c0_i32_1 = arith.constant 0 : i32
    return %c0_i32, %c0_i32_0 : i32, i32
  }
  func.func @transform_3(%arg0: i32, %arg1: i32) -> (i32, i32) {
    %c0_i32 = arith.constant 0 : i32
    %c0_i32_0 = arith.constant 0 : i32
    %c0_i32_1 = arith.constant 0 : i32
    return %c0_i32, %c0_i32_0 : i32, i32
  }
  func.func @transform_4(%arg0: i32, %arg1: i32) -> (i32, i32) {
    %c0_i32 = arith.constant 0 : i32
    %c0_i32_0 = arith.constant 0 : i32
    %c0_i32_1 = arith.constant 0 : i32
    return %c0_i32, %c0_i32_0 : i32, i32
  }
  func.func @transform_5(%arg0: i32, %arg1: i32) -> (i32, i32) {
    %c0_i32 = arith.constant 0 : i32
    %c0_i32_0 = arith.constant 0 : i32
    %c0_i32_1 = arith.constant 0 : i32
    return %c0_i32, %c0_i32_0 : i32, i32
  }
  func.func @transform_6(%arg0: i32, %arg1: i32) -> (i32, i32) {
    %c0_i32 = arith.constant 0 : i32
    %c0_i32_0 = arith.constant 0 : i32
    %c0_i32_1 = arith.constant 0 : i32
    return %c0_i32, %c0_i32_0 : i32, i32
  }
  func.func @transform_7(%arg0: i32, %arg1: i32) -> (i32, i32) {
    %c0_i32 = arith.constant 0 : i32
    %c0_i32_0 = arith.constant 0 : i32
    %c0_i32_1 = arith.constant 0 : i32
    return %c0_i32, %c0_i32_0 : i32, i32
  }
  func.func @transform_8(%arg0: i32, %arg1: i32) -> (i32, i32) {
    %c0_i32 = arith.constant 0 : i32
    %c0_i32_0 = arith.constant 0 : i32
    %c0_i32_1 = arith.constant 0 : i32
    return %c0_i32, %c0_i32_0 : i32, i32
  }
  func.func @transform_9(%arg0: i32, %arg1: i32) -> (i32, i32) {
    %c0_i32 = arith.constant 0 : i32
    %c0_i32_0 = arith.constant 0 : i32
    %c0_i32_1 = arith.constant 0 : i32
    return %c0_i32, %c0_i32_0 : i32, i32
  }
  func.func @transform_10(%arg0: i32, %arg1: i32) -> (i32, i32) {
    %c0_i32 = arith.constant 0 : i32
    %c0_i32_0 = arith.constant 0 : i32
    %c0_i32_1 = arith.constant 0 : i32
    return %c0_i32, %c0_i32_0 : i32, i32
  }
  func.func @transform_11(%arg0: i32, %arg1: i32) -> (i32, i32) {
    %c0_i32 = arith.constant 0 : i32
    %c0_i32_0 = arith.constant 0 : i32
    %c0_i32_1 = arith.constant 0 : i32
    return %c0_i32, %c0_i32_0 : i32, i32
  }
  func.func @transform_12(%arg0: i32, %arg1: i32) -> (i32, i32, i32) {
    %c0_i32 = arith.constant 0 : i32
    %c0_i32_0 = arith.constant 0 : i32
    return %arg0, %c0_i32, %arg1 : i32, i32, i32
  }
}

</mosaic_0001>

<llo_original>
// kernel: tpu_custom_call.1
$region0: #{tpu_custom_call.1}
  #allocation0 [shape = 'u32[]', space=smem, size = 0x4, offset = 0x4, fixed_abs, tag = 'smem constant byte address 0x4 - core index']
  #allocation1 [shape = 'u32[72,128]{1,0:T(1,128)}', space=vmem, size = 0x9000, scoped, tag = 'internal scratch']
  #allocation2 [shape = 'f32[16,290]{1,0:T(8,128)}', space=vmem, size = 0x6000, scoped, tag = 'scratch operand']
  %s0 = inlined_call_operand.vmem [shape: f32[2,4,256], index: 0, kind: input, shape index: {}]
  %s1 = inlined_call_operand.vmem [shape: f32[16,4], index: 1, kind: input, shape index: {}]
  %s2 = inlined_call_operand.vmem [shape: f32[16,1], index: 2, kind: input, shape index: {}]
  %s3 = inlined_call_operand.vmem [shape: f32[16,1], index: 3, kind: input, shape index: {}]
  %s4 = inlined_call_operand.vmem [shape: f32[16,9], index: 4, kind: input, shape index: {}]
  %s5 = inlined_call_operand.vmem [shape: f32[16,1], index: 5, kind: input, shape index: {}]
  %s6 = inlined_call_operand.vmem [shape: f32[16,1], index: 6, kind: input, shape index: {}]
  %s7 = inlined_call_operand.vmem [shape: f32[4,16], index: 7, kind: input, shape index: {}]
  %s8 = inlined_call_operand.vmem [shape: f32[4,1], index: 8, kind: input, shape index: {}]
  %s9 = inlined_call_operand.vmem [shape: f32[4,1], index: 9, kind: input, shape index: {}]
  %s10 = inlined_call_operand.vmem [shape: f32[1,256], index: 10, kind: input, shape index: {}]
  %s11 = inlined_call_operand.vmem [shape: f32[1,256], index: 11, kind: input, shape index: {}]
  %s12 = inlined_call_operand.hbm [shape: f32[2,4,256], index: 12, kind: output, shape index: {}]
  %s13 = sld [smem:[#allocation0]]
  $region85: #{tpu_custom_call.1} parent=0
    _
  %s15 = ssub.s32 1, %s13
  %s16 = scalar_select 0, %s15, %s13
  $region1: #{tpu_custom_call.1} parent=0
    #allocation3 [shape = 'u8[8192]{0}', space=vmem, size = 0x2000, scoped, tag = 'output window, operand 0']
    #allocation4 [shape = 's32[2]{0}', space=sflag, size = 0x8, scoped, tag = 'scoped memory for tpu_custom_call.1']
    %17 = vsyncpa [#allocation4], 0
    %s18 = scalar_lea.sflag [#allocation4], 1
    %19 = vsyncpa %s18, 0
    loop: start=0, step=1, limit=4
    $region2: #{tpu_custom_call.1} parent=1 // loop_pre_header
      _
    $region3: #{tpu_custom_call.1} parent=1 // loop_header
      %s21 = sphi 0, %s25
      %p22 = scmp.ge.s32.totalorder %s21, 4
      %s28 = sphi 0, %s40
      %s29 = sphi 0, %s36
      %s30 = sphi 0, %s28
      %s31 = sphi 0, %s29
      %s32 = sphi 0, %s30
      %s33 = sphi 0, %s31
      %s43 = sphi 0, %s45
      %s46 = sphi 0, %s43
      %s47 = sphi 0, %s46
      %s63 = sphi 0, %s47
      %s67 = sphi 0, %s67
      %s69 = sphi 0, %s67
      %s70 = sphi 0, %s69
      %s84 = sphi 0, %s70
      %s88 = sphi 0, %s88
      %s90 = sphi 0, %s88
      %s91 = sphi 0, %s90
      %s105 = sphi 0, %s91
      %s109 = sphi 0, %s109
      %s111 = sphi 0, %s109
      %s112 = sphi 0, %s111
      %s126 = sphi 0, %s112
      %s130 = sphi 0, %s130
      %s132 = sphi 0, %s130
      %s133 = sphi 0, %s132
      %s147 = sphi 0, %s133
      %s151 = sphi 0, %s151
      %s153 = sphi 0, %s151
      %s154 = sphi 0, %s153
      %s168 = sphi 0, %s154
      %s172 = sphi 0, %s172
      %s174 = sphi 0, %s172
      %s175 = sphi 0, %s174
      %s189 = sphi 0, %s175
      %s193 = sphi 0, %s193
      %s195 = sphi 0, %s193
      %s196 = sphi 0, %s195
      %s210 = sphi 0, %s196
      %s214 = sphi 0, %s214
      %s216 = sphi 0, %s214
      %s217 = sphi 0, %s216
      %s231 = sphi 0, %s217
      %s235 = sphi 0, %s235
      %s237 = sphi 0, %s235
      %s238 = sphi 0, %s237
      %s252 = sphi 0, %s238
      %s256 = sphi 0, %s256
      %s258 = sphi 0, %s256
      %s259 = sphi 0, %s258
      %s273 = sphi 0, %s259
      %s277 = sphi 0, %s277
      %s279 = sphi 0, %s277
      %s280 = sphi 0, %s279
      %s294 = sphi 0, %s280
      %s302 = sphi 0, %s304
      %s305 = sphi 0, %s302
      %s306 = sphi 0, %s305
      %s322 = sphi 0, %s306
    $region4: #{tpu_custom_call.1} parent=1 // loop_header_branch
      %24 = sbr.rel (%p22) target = $region8
    $region5: #{tpu_custom_call.1} parent=1 // loop_body
      %s26 = ssub.s32 %s21, 1
      %s27 = ssub.s32 %s21, 2
      %s34 = sadd.s32 1, %s29
      %p35 = scmp.ge.s32.totalorder %s34, 1
      %s36 = scalar_select %p35, 0, %s34
      %s37 = sadd.s32 1, %s28
      %s38 = scalar_select %p35, %s37, %s28
      %p39 = scmp.ge.s32.totalorder %s38, 2
      %s40 = scalar_select %p39, 0, %s38
      %s41 = ssub.s32 %s28, %s40
      %p42 = scmp.eq.s32.totalorder %s41, 0
      %s44 = sadd.s32 %s43, 1
      %s45 = scalar_select %p42, %s43, %s44
      %p48 = pneg %p42
      %p49 = scmp.eq.s32.totalorder %s21, 1
      %p50 = por %p48, %p49
      %p51 = scmp.ne.s32.totalorder %s43, %s46
      %p52 = scmp.eq.s32.totalorder %s21, 0
      %p53 = por %p51, %p52
      %p54 = scmp.ne.s32.totalorder %s43, %s46
      %p55 = scmp.eq.s32.totalorder %s26, 1
      %p56 = por %p54, %p55
      %p57 = scmp.ne.s32.totalorder %s46, %s47
      %p58 = scmp.eq.s32.totalorder %s26, 0
      %p59 = por %p57, %p58
      %p60 = scmp.ne.s32.totalorder %s46, %s47
      %p61 = scmp.eq.s32.totalorder %s27, 1
      %p62 = por %p60, %p61
      %p64 = scmp.ne.s32.totalorder %s47, %s63
      %p65 = scmp.eq.s32.totalorder %s27, 0
      %p66 = por %p64, %p65
      %s68 = sadd.s32 %s67, 1
      %p71 = scmp.eq.s32.totalorder %s21, 1
      %p72 = scmp.ne.s32.totalorder %s67, %s69
      %p73 = scmp.eq.s32.totalorder %s21, 0
      %p74 = por %p72, %p73
      %p75 = scmp.ne.s32.totalorder %s67, %s69
      %p76 = scmp.eq.s32.totalorder %s26, 1
      %p77 = por %p75, %p76
      %p78 = scmp.ne.s32.totalorder %s69, %s70
      %p79 = scmp.eq.s32.totalorder %s26, 0
      %p80 = por %p78, %p79
      %p81 = scmp.ne.s32.totalorder %s69, %s70
      %p82 = scmp.eq.s32.totalorder %s27, 1
      %p83 = por %p81, %p82
      %p85 = scmp.ne.s32.totalorder %s70, %s84
      %p86 = scmp.eq.s32.totalorder %s27, 0
      %p87 = por %p85, %p86
      %s89 = sadd.s32 %s88, 1
      %p92 = scmp.eq.s32.totalorder %s21, 1
      %p93 = scmp.ne.s32.totalorder %s88, %s90
      %p94 = scmp.eq.s32.totalorder %s21, 0
      %p95 = por %p93, %p94
      %p96 = scmp.ne.s32.totalorder %s88, %s90
      %p97 = scmp.eq.s32.totalorder %s26, 1
      %p98 = por %p96, %p97
      %p99 = scmp.ne.s32.totalorder %s90, %s91
      %p100 = scmp.eq.s32.totalorder %s26, 0
      %p101 = por %p99, %p100
      %p102 = scmp.ne.s32.totalorder %s90, %s91
      %p103 = scmp.eq.s32.totalorder %s27, 1
      %p104 = por %p102, %p103
      %p106 = scmp.ne.s32.totalorder %s91, %s105
      %p107 = scmp.eq.s32.totalorder %s27, 0
      %p108 = por %p106, %p107
      %s110 = sadd.s32 %s109, 1
      %p113 = scmp.eq.s32.totalorder %s21, 1
      %p114 = scmp.ne.s32.totalorder %s109, %s111
      %p115 = scmp.eq.s32.totalorder %s21, 0
      %p116 = por %p114, %p115
      %p117 = scmp.ne.s32.totalorder %s109, %s111
      %p118 = scmp.eq.s32.totalorder %s26, 1
      %p119 = por %p117, %p118
      %p120 = scmp.ne.s32.totalorder %s111, %s112
      %p121 = scmp.eq.s32.totalorder %s26, 0
      %p122 = por %p120, %p121
      %p123 = scmp.ne.s32.totalorder %s111, %s112
      %p124 = scmp.eq.s32.totalorder %s27, 1
      %p125 = por %p123, %p124
      %p127 = scmp.ne.s32.totalorder %s112, %s126
      %p128 = scmp.eq.s32.totalorder %s27, 0
      %p129 = por %p127, %p128
      %s131 = sadd.s32 %s130, 1
      %p134 = scmp.eq.s32.totalorder %s21, 1
      %p135 = scmp.ne.s32.totalorder %s130, %s132
      %p136 = scmp.eq.s32.totalorder %s21, 0
      %p137 = por %p135, %p136
      %p138 = scmp.ne.s32.totalorder %s130, %s132
      %p139 = scmp.eq.s32.totalorder %s26, 1
      %p140 = por %p138, %p139
      %p141 = scmp.ne.s32.totalorder %s132, %s133
      %p142 = scmp.eq.s32.totalorder %s26, 0
      %p143 = por %p141, %p142
      %p144 = scmp.ne.s32.totalorder %s132, %s133
      %p145 = scmp.eq.s32.totalorder %s27, 1
      %p146 = por %p144, %p145
      %p148 = scmp.ne.s32.totalorder %s133, %s147
      %p149 = scmp.eq.s32.totalorder %s27, 0
      %p150 = por %p148, %p149
      %s152 = sadd.s32 %s151, 1
      %p155 = scmp.eq.s32.totalorder %s21, 1
      %p156 = scmp.ne.s32.totalorder %s151, %s153
      %p157 = scmp.eq.s32.totalorder %s21, 0
      %p158 = por %p156, %p157
      %p159 = scmp.ne.s32.totalorder %s151, %s153
      %p160 = scmp.eq.s32.totalorder %s26, 1
      %p161 = por %p159, %p160
      %p162 = scmp.ne.s32.totalorder %s153, %s154
      %p163 = scmp.eq.s32.totalorder %s26, 0
      %p164 = por %p162, %p163
      %p165 = scmp.ne.s32.totalorder %s153, %s154
      %p166 = scmp.eq.s32.totalorder %s27, 1
      %p167 = por %p165, %p166
      %p169 = scmp.ne.s32.totalorder %s154, %s168
      %p170 = scmp.eq.s32.totalorder %s27, 0
      %p171 = por %p169, %p170
      %s173 = sadd.s32 %s172, 1
      %p176 = scmp.eq.s32.totalorder %s21, 1
      %p177 = scmp.ne.s32.totalorder %s172, %s174
      %p178 = scmp.eq.s32.totalorder %s21, 0
      %p179 = por %p177, %p178
      %p180 = scmp.ne.s32.totalorder %s172, %s174
      %p181 = scmp.eq.s32.totalorder %s26, 1
      %p182 = por %p180, %p181
      %p183 = scmp.ne.s32.totalorder %s174, %s175
      %p184 = scmp.eq.s32.totalorder %s26, 0
      %p185 = por %p183, %p184
      %p186 = scmp.ne.s32.totalorder %s174, %s175
      %p187 = scmp.eq.s32.totalorder %s27, 1
      %p188 = por %p186, %p187
      %p190 = scmp.ne.s32.totalorder %s175, %s189
      %p191 = scmp.eq.s32.totalorder %s27, 0
      %p192 = por %p190, %p191
      %s194 = sadd.s32 %s193, 1
      %p197 = scmp.eq.s32.totalorder %s21, 1
      %p198 = scmp.ne.s32.totalorder %s193, %s195
      %p199 = scmp.eq.s32.totalorder %s21, 0
      %p200 = por %p198, %p199
      %p201 = scmp.ne.s32.totalorder %s193, %s195
      %p202 = scmp.eq.s32.totalorder %s26, 1
      %p203 = por %p201, %p202
      %p204 = scmp.ne.s32.totalorder %s195, %s196
      %p205 = scmp.eq.s32.totalorder %s26, 0
      %p206 = por %p204, %p205
      %p207 = scmp.ne.s32.totalorder %s195, %s196
      %p208 = scmp.eq.s32.totalorder %s27, 1
      %p209 = por %p207, %p208
      %p211 = scmp.ne.s32.totalorder %s196, %s210
      %p212 = scmp.eq.s32.totalorder %s27, 0
      %p213 = por %p211, %p212
      %s215 = sadd.s32 %s214, 1
      %p218 = scmp.eq.s32.totalorder %s21, 1
      %p219 = scmp.ne.s32.totalorder %s214, %s216
      %p220 = scmp.eq.s32.totalorder %s21, 0
      %p221 = por %p219, %p220
      %p222 = scmp.ne.s32.totalorder %s214, %s216
      %p223 = scmp.eq.s32.totalorder %s26, 1
      %p224 = por %p222, %p223
      %p225 = scmp.ne.s32.totalorder %s216, %s217
      %p226 = scmp.eq.s32.totalorder %s26, 0
      %p227 = por %p225, %p226
      %p228 = scmp.ne.s32.totalorder %s216, %s217
      %p229 = scmp.eq.s32.totalorder %s27, 1
      %p230 = por %p228, %p229
      %p232 = scmp.ne.s32.totalorder %s217, %s231
      %p233 = scmp.eq.s32.totalorder %s27, 0
      %p234 = por %p232, %p233
      %s236 = sadd.s32 %s235, 1
      %p239 = scmp.eq.s32.totalorder %s21, 1
      %p240 = scmp.ne.s32.totalorder %s235, %s237
      %p241 = scmp.eq.s32.totalorder %s21, 0
      %p242 = por %p240, %p241
      %p243 = scmp.ne.s32.totalorder %s235, %s237
      %p244 = scmp.eq.s32.totalorder %s26, 1
      %p245 = por %p243, %p244
      %p246 = scmp.ne.s32.totalorder %s237, %s238
      %p247 = scmp.eq.s32.totalorder %s26, 0
      %p248 = por %p246, %p247
      %p249 = scmp.ne.s32.totalorder %s237, %s238
      %p250 = scmp.eq.s32.totalorder %s27, 1
      %p251 = por %p249, %p250
      %p253 = scmp.ne.s32.totalorder %s238, %s252
      %p254 = scmp.eq.s32.totalorder %s27, 0
      %p255 = por %p253, %p254
      %s257 = sadd.s32 %s256, 1
      %p260 = scmp.eq.s32.totalorder %s21, 1
      %p261 = scmp.ne.s32.totalorder %s256, %s258
      %p262 = scmp.eq.s32.totalorder %s21, 0
      %p263 = por %p261, %p262
      %p264 = scmp.ne.s32.totalorder %s256, %s258
      %p265 = scmp.eq.s32.totalorder %s26, 1
      %p266 = por %p264, %p265
      %p267 = scmp.ne.s32.totalorder %s258, %s259
      %p268 = scmp.eq.s32.totalorder %s26, 0
      %p269 = por %p267, %p268
      %p270 = scmp.ne.s32.totalorder %s258, %s259
      %p271 = scmp.eq.s32.totalorder %s27, 1
      %p272 = por %p270, %p271
      %p274 = scmp.ne.s32.totalorder %s259, %s273
      %p275 = scmp.eq.s32.totalorder %s27, 0
      %p276 = por %p274, %p275
      %s278 = sadd.s32 %s277, 1
      %p281 = scmp.eq.s32.totalorder %s21, 1
      %p282 = scmp.ne.s32.totalorder %s277, %s279
      %p283 = scmp.eq.s32.totalorder %s21, 0
      %p284 = por %p282, %p283
      %p285 = scmp.ne.s32.totalorder %s277, %s279
      %p286 = scmp.eq.s32.totalorder %s26, 1
      %p287 = por %p285, %p286
      %p288 = scmp.ne.s32.totalorder %s279, %s280
      %p289 = scmp.eq.s32.totalorder %s26, 0
      %p290 = por %p288, %p289
      %p291 = scmp.ne.s32.totalorder %s279, %s280
      %p292 = scmp.eq.s32.totalorder %s27, 1
      %p293 = por %p291, %p292
      %p295 = scmp.ne.s32.totalorder %s280, %s294
      %p296 = scmp.eq.s32.totalorder %s27, 0
      %p297 = por %p295, %p296
      %s298 = ssub.s32 %s28, %s40
      %s299 = ssub.s32 %s29, %s36
      %s300 = sor.u32 %s298, %s299
      %p301 = scmp.eq.s32.totalorder %s300, 0
      %s303 = sadd.s32 %s302, 1
      %s304 = scalar_select %p301, %s302, %s303
      %p307 = pneg %p301
      %p308 = scmp.eq.s32.totalorder %s21, 1
      %p309 = por %p307, %p308
      %p310 = scmp.ne.s32.totalorder %s302, %s305
      %p311 = scmp.eq.s32.totalorder %s21, 0
      %p312 = por %p310, %p311
      %p313 = scmp.ne.s32.totalorder %s302, %s305
      %p314 = scmp.eq.s32.totalorder %s26, 1
      %p315 = por %p313, %p314
      %p316 = scmp.ne.s32.totalorder %s305, %s306
      %p317 = scmp.eq.s32.totalorder %s26, 0
      %p318 = por %p316, %p317
      %p319 = scmp.ne.s32.totalorder %s305, %s306
      %p320 = scmp.eq.s32.totalorder %s27, 1
      %p321 = por %p319, %p320
      %p323 = scmp.ne.s32.totalorder %s306, %s322
      %p324 = scmp.eq.s32.totalorder %s27, 0
      %p325 = por %p323, %p324
      %p326 = scmp.le.s32.totalorder 1, %s21
      %p327 = scmp.lt.s32.totalorder %s21, 3
      %p328 = pnand %p326, %p327
      %p329 = pneg %p328
      // Predicated region
      $region9: #{tpu_custom_call.1} parent=5 // pred_check
        _
      $region10: #{tpu_custom_call.1} parent=5 // pred_check_branch
        %331 = sbr.rel (%p328) target = $region12
      $region11: #{tpu_custom_call.1} parent=5 // pred_region
        %s332 = ssub.s32 %s21, 1
        // Predicated region
        $region13: #{tpu_custom_call.1} parent=11 // pred_check
          %p333 = pneg %p80
        $region14: #{tpu_custom_call.1} parent=11 // pred_check_branch
          %335 = sbr.rel (%p333) target = $region16
        $region15: #{tpu_custom_call.1} parent=11 // pred_region
          _
        $region16: #{tpu_custom_call.1} parent=11 // pred_fallthru
          _
        // Predicated region
        $region17: #{tpu_custom_call.1} parent=11 // pred_check
          %p336 = pneg %p101
        $region18: #{tpu_custom_call.1} parent=11 // pred_check_branch
          %338 = sbr.rel (%p336) target = $region20
        $region19: #{tpu_custom_call.1} parent=11 // pred_region
          _
        $region20: #{tpu_custom_call.1} parent=11 // pred_fallthru
          _
        // Predicated region
        $region21: #{tpu_custom_call.1} parent=11 // pred_check
          %p339 = pneg %p122
        $region22: #{tpu_custom_call.1} parent=11 // pred_check_branch
          %341 = sbr.rel (%p339) target = $region24
        $region23: #{tpu_custom_call.1} parent=11 // pred_region
          _
        $region24: #{tpu_custom_call.1} parent=11 // pred_fallthru
          _
        // Predicated region
        $region25: #{tpu_custom_call.1} parent=11 // pred_check
          %p342 = pneg %p143
        $region26: #{tpu_custom_call.1} parent=11 // pred_check_branch
          %344 = sbr.rel (%p342) target = $region28
        $region27: #{tpu_custom_call.1} parent=11 // pred_region
          _
        $region28: #{tpu_custom_call.1} parent=11 // pred_fallthru
          _
        // Predicated region
        $region29: #{tpu_custom_call.1} parent=11 // pred_check
          %p345 = pneg %p164
        $region30: #{tpu_custom_call.1} parent=11 // pred_check_branch
          %347 = sbr.rel (%p345) target = $region32
        $region31: #{tpu_custom_call.1} parent=11 // pred_region
          _
        $region32: #{tpu_custom_call.1} parent=11 // pred_fallthru
          _
        // Predicated region
        $region33: #{tpu_custom_call.1} parent=11 // pred_check
          %p348 = pneg %p185
        $region34: #{tpu_custom_call.1} parent=11 // pred_check_branch
          %350 = sbr.rel (%p348) target = $region36
        $region35: #{tpu_custom_call.1} parent=11 // pred_region
          _
        $region36: #{tpu_custom_call.1} parent=11 // pred_fallthru
          _
        // Predicated region
        $region37: #{tpu_custom_call.1} parent=11 // pred_check
          %p351 = pneg %p206
        $region38: #{tpu_custom_call.1} parent=11 // pred_check_branch
          %353 = sbr.rel (%p351) target = $region40
        $region39: #{tpu_custom_call.1} parent=11 // pred_region
          _
        $region40: #{tpu_custom_call.1} parent=11 // pred_fallthru
          _
        // Predicated region
        $region41: #{tpu_custom_call.1} parent=11 // pred_check
          %p354 = pneg %p227
        $region42: #{tpu_custom_call.1} parent=11 // pred_check_branch
          %356 = sbr.rel (%p354) target = $region44
        $region43: #{tpu_custom_call.1} parent=11 // pred_region
          _
        $region44: #{tpu_custom_call.1} parent=11 // pred_fallthru
          _
        // Predicated region
        $region45: #{tpu_custom_call.1} parent=11 // pred_check
          %p357 = pneg %p248
        $region46: #{tpu_custom_call.1} parent=11 // pred_check_branch
          %359 = sbr.rel (%p357) target = $region48
        $region47: #{tpu_custom_call.1} parent=11 // pred_region
          _
        $region48: #{tpu_custom_call.1} parent=11 // pred_fallthru
          _
        // Predicated region
        $region49: #{tpu_custom_call.1} parent=11 // pred_check
          %p360 = pneg %p269
        $region50: #{tpu_custom_call.1} parent=11 // pred_check_branch
          %362 = sbr.rel (%p360) target = $region52
        $region51: #{tpu_custom_call.1} parent=11 // pred_region
          _
        $region52: #{tpu_custom_call.1} parent=11 // pred_fallthru
          _
        // Predicated region
        $region53: #{tpu_custom_call.1} parent=11 // pred_check
          %p363 = pneg %p290
        $region54: #{tpu_custom_call.1} parent=11 // pred_check_branch
          %365 = sbr.rel (%p363) target = $region56
        $region55: #{tpu_custom_call.1} parent=11 // pred_region
          _
        $region56: #{tpu_custom_call.1} parent=11 // pred_fallthru
          _
      $region12: #{tpu_custom_call.1} parent=5 // pred_fallthru
        _
      %p366 = scmp.lt.s32.totalorder %s21, 2
      // Predicated region
      $region57: #{tpu_custom_call.1} parent=5 // pred_check
        %p367 = pneg %p366
      $region58: #{tpu_custom_call.1} parent=5 // pred_check_branch
        %369 = sbr.rel (%p367) target = $region60
      $region59: #{tpu_custom_call.1} parent=5 // pred_region
        // Predicated region
        $region61: #{tpu_custom_call.1} parent=59 // pred_check
          %p370 = pneg %p53
        $region62: #{tpu_custom_call.1} parent=59 // pred_check_branch
          %372 = sbr.rel (%p370) target = $region64
        $region63: #{tpu_custom_call.1} parent=59 // pred_region
          %p373 = scmp.lt.s32.totalorder %s28, 1
          %s374 = scalar_select %p373, %s28, 1
          %s375 = smul.addr %s374, 2
          %s376 = smul.addr %s375, 4
          %s377 = scalar_lea.vmem %s0, %s376
        $region64: #{tpu_custom_call.1} parent=59 // pred_fallthru
          _
      $region60: #{tpu_custom_call.1} parent=5 // pred_fallthru
        _
      %p378 = scmp.le.s32.totalorder 1, %s21
      %p379 = scmp.lt.s32.totalorder %s21, 3
      %p380 = pnand %p378, %p379
      %p381 = pneg %p380
      // Predicated region
      $region65: #{tpu_custom_call.1} parent=5 // pred_check
        _
      $region66: #{tpu_custom_call.1} parent=5 // pred_check_branch
        %383 = sbr.rel (%p380) target = $region68
      $region67: #{tpu_custom_call.1} parent=5 // pred_region
        %s384 = ssub.s32 %s21, 1
        %p385 = scmp.lt.s32.totalorder %s30, 1
        %s386 = scalar_select %p385, %s30, 1
        %s387 = smul.addr %s386, 2
        %s388 = smul.addr %s387, 4
        %s389 = scalar_lea.vmem %s0, %s388
        %p390 = pneg %p59
        %p391 = pneg %p56
        %p392 = pneg %p80
        %p393 = pneg %p77
        %p394 = pneg %p101
        %p395 = pneg %p98
        %p396 = pneg %p122
        %p397 = pneg %p119
        %p398 = pneg %p143
        %p399 = pneg %p140
        %p400 = pneg %p164
        %p401 = pneg %p161
        %p402 = pneg %p185
        %p403 = pneg %p182
        %p404 = pneg %p206
        %p405 = pneg %p203
        %p406 = pneg %p227
        %p407 = pneg %p224
        %p408 = pneg %p248
        %p409 = pneg %p245
        %p410 = pneg %p269
        %p411 = pneg %p266
        %p412 = pneg %p290
        %p413 = pneg %p287
        %p414 = pneg %p318
        %p415 = pneg %p315
        %s416 = sand.u32 %s305, 1
        %s417 = scalar_lea.sflag [#allocation4], %s416
        %s418 = sand.u32 %s305, 1
        %s419 = smul.addr %s418, 8
        %s420 = scalar_lea.vmem [#allocation3], %s419
        %p421 = scmp.lt.s32.totalorder %s30, 1
        %s422 = scalar_select %p421, %s30, 1
        %s423 = smul.addr %s422, 2
        %s424 = smul.addr %s423, 4
        %s425 = scalar_lea.vmem %s0, %s424
        %s426 = smul.u32 2, %s31
        %p427 = scmp.eq.s32.totalorder %s31, 0
        // Predicated region
        $region69: #{tpu_custom_call.1} parent=67 // pred_check
          %p428 = pneg %p427
        $region70: #{tpu_custom_call.1} parent=67 // pred_check_branch
          %430 = sbr.rel (%p428) target = $region72
        $region71: #{tpu_custom_call.1} parent=67 // pred_region
          %vm431 = vcmask 138240
          %432 = vst.msk [vmem:[#allocation2] sm:$0xff] %vm431, 0.0
          %433 = vst.msk [vmem:[#allocation2 + $0x18] sm:$0xff] %vm431, 0.0
          %vm434 = vcmask 277640
          %435 = vst.msk [vmem:[#allocation2 + $0x10] sm:$0xff] %vm434, 0.0
          %436 = vst.msk [vmem:[#allocation2 + $0x28] sm:$0xff] %vm434, 0.0
          %v437 = vld [vmem:[%s425] sm:$0xff]
          %v438 = vld [vmem:[%s1] sm:$0xff]
          %v439 = vld [vmem:[%s1 + $0x8] sm:$0xff]
          %441 = vst [vmem:[#allocation1] ss:$2 sm:$0xff] %v437
          %v442 = vld.sshfl [vmem:[#allocation1] sm:$0xff pattern:$0x75316420]
          %v443 = vld.sshfl [vmem:[#allocation1 + $0x8] sm:$0xff pattern:$0x75316420]
          %vm444 = vcmask 31744
          %v446 = vsel %vm444, %v438, 0
          %v449 = vsel %vm444, %v439, 0
          %vm451 = vcmask 1043456
          %v452 = vsel %vm451, %v442, 0
          %v454 = vsel %vm451, %v443, 0
          %456 = vmatpush.msra.mxu0 0.0
          %457 = vmatpush.msra.mxu0 0.0
          %458 = vmatpush.msra.mxu0 0.0
          %459 = vmatpush.msra.mxu0 0.0
          %460 = vmatpush.msra.mxu0 0.0
          %461 = vmatpush.msra.mxu0 0.0
          %462 = vmatpush.msra.mxu0 0.0
          %463 = vmatpush.msra.mxu0 0.0
          %464 = vmatpush.msra.mxu0 0.0
          %465 = vmatpush.msra.mxu0 0.0
          %466 = vmatpush.msra.mxu0 0.0
          %467 = vmatpush.msra.mxu0 0.0
          %468 = vmatpush.msra.mxu0 0.0
          %469 = vmatpush.msra.mxu0 0.0
          %470 = vmatpush.msra.mxu0 0.0
          %471 = vmatpush.msra.mxu0 %v452
          %472 = vmatmul.f32.gmra.mxu0 %v446
          %v473 = vpop.f32.mrf.mxu0
          %v474 = vadd.f32 0.0, %v473
          %475 = vmatmul.f32.gmra.mxu0 %v449
          %v476 = vpop.f32.mrf.mxu0
          %v477 = vadd.f32 0.0, %v476
          %478 = vdwg.mxu0
          %479 = vmatpush.msra.mxu0 0.0
          %480 = vmatpush.msra.mxu0 0.0
          %481 = vmatpush.msra.mxu0 0.0
          %482 = vmatpush.msra.mxu0 0.0
          %483 = vmatpush.msra.mxu0 0.0
          %484 = vmatpush.msra.mxu0 0.0
          %485 = vmatpush.msra.mxu0 0.0
          %486 = vmatpush.msra.mxu0 0.0
          %487 = vmatpush.msra.mxu0 0.0
          %488 = vmatpush.msra.mxu0 0.0
          %489 = vmatpush.msra.mxu0 0.0
          %490 = vmatpush.msra.mxu0 0.0
          %491 = vmatpush.msra.mxu0 0.0
          %492 = vmatpush.msra.mxu0 0.0
          %493 = vmatpush.msra.mxu0 0.0
          %494 = vmatpush.msra.mxu0 %v454
          %495 = vmatmul.f32.gmra.mxu0 %v446
          %v496 = vpop.f32.mrf.mxu0
          %v497 = vadd.f32 0.0, %v496
          %498 = vmatmul.f32.gmra.mxu0 %v449
          %v499 = vpop.f32.mrf.mxu0
          %v500 = vadd.f32 0.0, %v499
          %501 = vdwg.mxu0
          %v502 = vld [vmem:[%s2] sm:$0xff]
          %v503 = vld [vmem:[%s2 + $0x8] sm:$0xff]
          %505 = vset.pattern.permute.xlu0 0
          %506 = vperm.xlu0 %505, %v502
          %v507 = vpop.permute.xlu0 %506
          %510 = vset.pattern.permute.xlu0 0
          %511 = vperm.xlu0 %510, %v503
          %v512 = vpop.permute.xlu0 %511
          %v514 = vmul.f32 %v474, %v507
          %v515 = vmul.f32 %v497, %v507
          %v516 = vmul.f32 %v477, %v512
          %v517 = vmul.f32 %v500, %v512
          %v518 = vld [vmem:[%s3] sm:$0xff]
          %v519 = vld [vmem:[%s3 + $0x8] sm:$0xff]
          %521 = vset.pattern.permute.xlu0 0
          %522 = vperm.xlu0 %521, %v518
          %v523 = vpop.permute.xlu0 %522
          %526 = vset.pattern.permute.xlu0 0
          %527 = vperm.xlu0 %526, %v519
          %v528 = vpop.permute.xlu0 %527
          %v530 = vadd.f32 %v514, %v523
          %v531 = vadd.f32 %v515, %v523
          %v532 = vadd.f32 %v516, %v528
          %v533 = vadd.f32 %v517, %v528
          %v534 = vmax.f32 %v530, 0.0
          %v535 = vmax.f32 %v531, 0.0
          %v536 = vmax.f32 %v532, 0.0
          %v537 = vmax.f32 %v533, 0.0
          %v538 = vmin.f32 %v534, 6.0
          %v539 = vmin.f32 %v535, 6.0
          %v540 = vmin.f32 %v536, 6.0
          %v541 = vmin.f32 %v537, 6.0
          %546 = vrot.lane.b32.xlu0 %v538, 17
          %v547 = vpop.permute.xlu0 %546
          %548 = vrot.lane.b32.xlu0 %v539, 17
          %v549 = vpop.permute.xlu0 %548
          %550 = vrot.lane.b32.xlu0 %v540, 17
          %v551 = vpop.permute.xlu0 %550
          %552 = vrot.lane.b32.xlu0 %v541, 17
          %v553 = vpop.permute.xlu0 %552
          %v554 = vsel %vm431, %v547, %v549
          %v555 = vsel %vm431, %v551, %v553
          %vm562 = vcmask 1047688
          %563 = vst.msk [vmem:[#allocation2] sm:$0xff] %vm562, %v547
          %564 = vst [vmem:[#allocation2 + $0x8] sm:$0xff] %v554
          %565 = vst.msk [vmem:[#allocation2 + $0x10] sm:$0xff] %vm431, %v549
          %566 = vst.msk [vmem:[#allocation2 + $0x18] sm:$0xff] %vm562, %v551
          %567 = vst [vmem:[#allocation2 + $0x20] sm:$0xff] %v555
          %568 = vst.msk [vmem:[#allocation2 + $0x28] sm:$0xff] %vm431, %v553
        $region72: #{tpu_custom_call.1} parent=67 // pred_fallthru
          _
        %v569 = vld [vmem:[%s4] sm:$0xff]
        %v570 = vld [vmem:[%s4 + $0x8] sm:$0xff]
        %v571 = vld [vmem:[%s5] sm:$0xff]
        %v572 = vld [vmem:[%s5 + $0x8] sm:$0xff]
        %v573 = vld [vmem:[%s6] sm:$0xff]
        %v574 = vld [vmem:[%s6 + $0x8] sm:$0xff]
        %v575 = vld [vmem:[%s10] sm:$0x3]
        %v576 = vld [vmem:[%s11] sm:$0x3]
        %s577 = smul.u32 %s31, 256
        %s578 = sshra.s32 %s577, 7
        %s579 = sand.u32 %s577, 127
        %s580 = smul.addr %s578, 8
        %s581 = scalar_lea.vmem [#allocation2], %s580
        %v582 = vld [vmem:[%s581] sm:$0xff]
        %v583 = vld [vmem:[%s581 + $0x8] sm:$0xff]
        %v584 = vld [vmem:[%s581 + $0x10] sm:$0xff]
        %v585 = vld [vmem:[%s581 + $0x18] sm:$0xff]
        %v586 = vld [vmem:[%s581 + $0x20] sm:$0xff]
        %v587 = vld [vmem:[%s581 + $0x28] sm:$0xff]
        %589 = vset.pattern.permute.xlu0 0
        %590 = vperm.xlu0 %589, %v569
        %v591 = vpop.permute.xlu0 %590
        %594 = vset.pattern.permute.xlu0 0
        %595 = vperm.xlu0 %594, %v570
        %v596 = vpop.permute.xlu0 %595
        %v598 = vmul.f32 %v582, %v591
        %v599 = vmul.f32 %v583, %v591
        %v600 = vmul.f32 %v585, %v596
        %v601 = vmul.f32 %v586, %v596
        %v602 = vadd.f32 %v598, 0.0
        %v603 = vadd.f32 %v599, 0.0
        %v604 = vadd.f32 %v600, 0.0
        %v605 = vadd.f32 %v601, 0.0
        %606 = vset.pattern.permute.xlu0 3
        %607 = vperm.xlu0 %606, %v569
        %v608 = vpop.permute.xlu0 %607
        %610 = vset.pattern.permute.xlu0 3
        %611 = vperm.xlu0 %610, %v570
        %v612 = vpop.permute.xlu0 %611
        %v614 = vmul.f32 %v582, %v608
        %v615 = vmul.f32 %v583, %v608
        %v616 = vmul.f32 %v584, %v608
        %v617 = vmul.f32 %v585, %v612
        %v618 = vmul.f32 %v586, %v612
        %v619 = vmul.f32 %v587, %v612
        %626 = vrot.lane.b32.xlu0 %v614, 112
        %v627 = vpop.permute.xlu0 %626
        %628 = vrot.lane.b32.xlu0 %v615, 112
        %v629 = vpop.permute.xlu0 %628
        %630 = vrot.lane.b32.xlu0 %v616, 112
        %v631 = vpop.permute.xlu0 %630
        %632 = vrot.lane.b32.xlu0 %v617, 112
        %v633 = vpop.permute.xlu0 %632
        %634 = vrot.lane.b32.xlu0 %v618, 112
        %v635 = vpop.permute.xlu0 %634
        %636 = vrot.lane.b32.xlu0 %v619, 112
        %v637 = vpop.permute.xlu0 %636
        %vm638 = vcmask 916480
        %v639 = vsel %vm638, %v627, %v629
        %v640 = vsel %vm638, %v629, %v631
        %v641 = vsel %vm638, %v633, %v635
        %v642 = vsel %vm638, %v635, %v637
        %v647 = vadd.f32 %v602, %v639
        %v648 = vadd.f32 %v603, %v640
        %v649 = vadd.f32 %v604, %v641
        %v650 = vadd.f32 %v605, %v642
        %651 = vset.pattern.permute.xlu0 6
        %652 = vperm.xlu0 %651, %v569
        %v653 = vpop.permute.xlu0 %652
        %655 = vset.pattern.permute.xlu0 6
        %656 = vperm.xlu0 %655, %v570
        %v657 = vpop.permute.xlu0 %656
        %v659 = vmul.f32 %v582, %v653
        %v660 = vmul.f32 %v583, %v653
        %v661 = vmul.f32 %v584, %v653
        %v662 = vmul.f32 %v585, %v657
        %v663 = vmul.f32 %v586, %v657
        %v664 = vmul.f32 %v587, %v657
        %671 = vrot.lane.b32.xlu0 %v659, 96
        %v672 = vpop.permute.xlu0 %671
        %673 = vrot.lane.b32.xlu0 %v660, 96
        %v674 = vpop.permute.xlu0 %673
        %675 = vrot.lane.b32.xlu0 %v661, 96
        %v676 = vpop.permute.xlu0 %675
        %677 = vrot.lane.b32.xlu0 %v662, 96
        %v678 = vpop.permute.xlu0 %677
        %679 = vrot.lane.b32.xlu0 %v663, 96
        %v680 = vpop.permute.xlu0 %679
        %681 = vrot.lane.b32.xlu0 %v664, 96
        %v682 = vpop.permute.xlu0 %681
        %vm683 = vcmask 785408
        %v684 = vsel %vm683, %v672, %v674
        %v685 = vsel %vm683, %v674, %v676
        %v686 = vsel %vm683, %v678, %v680
        %v687 = vsel %vm683, %v680, %v682
        %v692 = vadd.f32 %v647, %v684
        %v693 = vadd.f32 %v648, %v685
        %v694 = vadd.f32 %v649, %v686
        %v695 = vadd.f32 %v650, %v687
        %696 = vset.pattern.permute.xlu0 1
        %697 = vperm.xlu0 %696, %v569
        %v698 = vpop.permute.xlu0 %697
        %700 = vset.pattern.permute.xlu0 1
        %701 = vperm.xlu0 %700, %v570
        %v702 = vpop.permute.xlu0 %701
        %v704 = vmul.f32 %v582, %v698
        %v705 = vmul.f32 %v583, %v698
        %v706 = vmul.f32 %v584, %v698
        %v707 = vmul.f32 %v585, %v702
        %v708 = vmul.f32 %v586, %v702
        %v709 = vmul.f32 %v587, %v702
        %v710 = vadd.f32 %v704, 0.0
        %v711 = vadd.f32 %v705, 0.0
        %v712 = vadd.f32 %v706, 0.0
        %v713 = vadd.f32 %v707, 0.0
        %v714 = vadd.f32 %v708, 0.0
        %v715 = vadd.f32 %v709, 0.0
        %716 = vset.pattern.permute.xlu0 4
        %717 = vperm.xlu0 %716, %v569
        %v718 = vpop.permute.xlu0 %717
        %720 = vset.pattern.permute.xlu0 4
        %721 = vperm.xlu0 %720, %v570
        %v722 = vpop.permute.xlu0 %721
        %v724 = vmul.f32 %v582, %v718
        %v725 = vmul.f32 %v583, %v718
        %v726 = vmul.f32 %v584, %v718
        %v727 = vmul.f32 %v585, %v722
        %v728 = vmul.f32 %v586, %v722
        %v729 = vmul.f32 %v587, %v722
        %736 = vrot.lane.b32.xlu0 %v724, 112
        %v737 = vpop.permute.xlu0 %736
        %738 = vrot.lane.b32.xlu0 %v725, 112
        %v739 = vpop.permute.xlu0 %738
        %740 = vrot.lane.b32.xlu0 %v726, 112
        %v741 = vpop.permute.xlu0 %740
        %742 = vrot.lane.b32.xlu0 %v727, 112
        %v743 = vpop.permute.xlu0 %742
        %744 = vrot.lane.b32.xlu0 %v728, 112
        %v745 = vpop.permute.xlu0 %744
        %746 = vrot.lane.b32.xlu0 %v729, 112
        %v747 = vpop.permute.xlu0 %746
        %v748 = vsel %vm638, %v737, %v739
        %v749 = vsel %vm638, %v739, %v741
        %v750 = vsel %vm638, %v743, %v745
        %v751 = vsel %vm638, %v745, %v747
        %v758 = vadd.f32 %v710, %v748
        %v759 = vadd.f32 %v711, %v749
        %v760 = vadd.f32 %v712, %v741
        %v761 = vadd.f32 %v713, %v750
        %v762 = vadd.f32 %v714, %v751
        %v763 = vadd.f32 %v715, %v747
        %764 = vset.pattern.permute.xlu0 7
        %765 = vperm.xlu0 %764, %v569
        %v766 = vpop.permute.xlu0 %765
        %768 = vset.pattern.permute.xlu0 7
        %769 = vperm.xlu0 %768, %v570
        %v770 = vpop.permute.xlu0 %769
        %v772 = vmul.f32 %v582, %v766
        %v773 = vmul.f32 %v583, %v766
        %v774 = vmul.f32 %v584, %v766
        %v775 = vmul.f32 %v585, %v770
        %v776 = vmul.f32 %v586, %v770
        %v777 = vmul.f32 %v587, %v770
        %784 = vrot.lane.b32.xlu0 %v772, 96
        %v785 = vpop.permute.xlu0 %784
        %786 = vrot.lane.b32.xlu0 %v773, 96
        %v787 = vpop.permute.xlu0 %786
        %788 = vrot.lane.b32.xlu0 %v774, 96
        %v789 = vpop.permute.xlu0 %788
        %790 = vrot.lane.b32.xlu0 %v775, 96
        %v791 = vpop.permute.xlu0 %790
        %792 = vrot.lane.b32.xlu0 %v776, 96
        %v793 = vpop.permute.xlu0 %792
        %794 = vrot.lane.b32.xlu0 %v777, 96
        %v795 = vpop.permute.xlu0 %794
        %v796 = vsel %vm683, %v785, %v787
        %v797 = vsel %vm683, %v787, %v789
        %v798 = vsel %vm683, %v791, %v793
        %v799 = vsel %vm683, %v793, %v795
        %v806 = vadd.f32 %v758, %v796
        %v807 = vadd.f32 %v759, %v797
        %v808 = vadd.f32 %v760, %v789
        %v809 = vadd.f32 %v761, %v798
        %v810 = vadd.f32 %v762, %v799
        %v811 = vadd.f32 %v763, %v795
        %812 = vset.pattern.permute.xlu0 2
        %813 = vperm.xlu0 %812, %v569
        %v814 = vpop.permute.xlu0 %813
        %816 = vset.pattern.permute.xlu0 2
        %817 = vperm.xlu0 %816, %v570
        %v818 = vpop.permute.xlu0 %817
        %v820 = vmul.f32 %v582, %v814
        %v821 = vmul.f32 %v583, %v814
        %v822 = vmul.f32 %v584, %v814
        %v823 = vmul.f32 %v585, %v818
        %v824 = vmul.f32 %v586, %v818
        %v825 = vmul.f32 %v587, %v818
        %v826 = vadd.f32 %v820, 0.0
        %v827 = vadd.f32 %v821, 0.0
        %v828 = vadd.f32 %v822, 0.0
        %v829 = vadd.f32 %v823, 0.0
        %v830 = vadd.f32 %v824, 0.0
        %v831 = vadd.f32 %v825, 0.0
        %832 = vset.pattern.permute.xlu0 5
        %833 = vperm.xlu0 %832, %v569
        %v834 = vpop.permute.xlu0 %833
        %836 = vset.pattern.permute.xlu0 5
        %837 = vperm.xlu0 %836, %v570
        %v838 = vpop.permute.xlu0 %837
        %v840 = vmul.f32 %v582, %v834
        %v841 = vmul.f32 %v583, %v834
        %v842 = vmul.f32 %v584, %v834
        %v843 = vmul.f32 %v585, %v838
        %v844 = vmul.f32 %v586, %v838
        %v845 = vmul.f32 %v587, %v838
        %852 = vrot.lane.b32.xlu0 %v840, 112
        %v853 = vpop.permute.xlu0 %852
        %854 = vrot.lane.b32.xlu0 %v841, 112
        %v855 = vpop.permute.xlu0 %854
        %856 = vrot.lane.b32.xlu0 %v842, 112
        %v857 = vpop.permute.xlu0 %856
        %858 = vrot.lane.b32.xlu0 %v843, 112
        %v859 = vpop.permute.xlu0 %858
        %860 = vrot.lane.b32.xlu0 %v844, 112
        %v861 = vpop.permute.xlu0 %860
        %862 = vrot.lane.b32.xlu0 %v845, 112
        %v863 = vpop.permute.xlu0 %862
        %v864 = vsel %vm638, %v853, %v855
        %v865 = vsel %vm638, %v855, %v857
        %v866 = vsel %vm638, %v859, %v861
        %v867 = vsel %vm638, %v861, %v863
        %v874 = vadd.f32 %v826, %v864
        %v875 = vadd.f32 %v827, %v865
        %v876 = vadd.f32 %v828, %v857
        %v877 = vadd.f32 %v829, %v866
        %v878 = vadd.f32 %v830, %v867
        %v879 = vadd.f32 %v831, %v863
        %880 = vset.pattern.permute.xlu0 8
        %881 = vperm.xlu0 %880, %v569
        %v882 = vpop.permute.xlu0 %881
        %884 = vset.pattern.permute.xlu0 8
        %885 = vperm.xlu0 %884, %v570
        %v886 = vpop.permute.xlu0 %885
        %v888 = vmul.f32 %v582, %v882
        %v889 = vmul.f32 %v583, %v882
        %v890 = vmul.f32 %v584, %v882
        %v891 = vmul.f32 %v585, %v886
        %v892 = vmul.f32 %v586, %v886
        %v893 = vmul.f32 %v587, %v886
        %900 = vrot.lane.b32.xlu0 %v888, 96
        %v901 = vpop.permute.xlu0 %900
        %902 = vrot.lane.b32.xlu0 %v889, 96
        %v903 = vpop.permute.xlu0 %902
        %904 = vrot.lane.b32.xlu0 %v890, 96
        %v905 = vpop.permute.xlu0 %904
        %906 = vrot.lane.b32.xlu0 %v891, 96
        %v907 = vpop.permute.xlu0 %906
        %908 = vrot.lane.b32.xlu0 %v892, 96
        %v909 = vpop.permute.xlu0 %908
        %910 = vrot.lane.b32.xlu0 %v893, 96
        %v911 = vpop.permute.xlu0 %910
        %v912 = vsel %vm683, %v901, %v903
        %v913 = vsel %vm683, %v903, %v905
        %v914 = vsel %vm683, %v907, %v909
        %v915 = vsel %vm683, %v909, %v911
        %v922 = vadd.f32 %v874, %v912
        %v923 = vadd.f32 %v875, %v913
        %v924 = vadd.f32 %v876, %v905
        %v925 = vadd.f32 %v877, %v914
        %v926 = vadd.f32 %v878, %v915
        %v927 = vadd.f32 %v879, %v911
        %v929 = vperm.slane %v575, 0
        %v930 = vperm.slane %v575, 1
        %v933 = vmul.f32 %v692, %v929
        %v934 = vmul.f32 %v693, %v930
        %v935 = vmul.f32 %v694, %v929
        %v936 = vmul.f32 %v695, %v930
        %941 = vrot.lane.b32.xlu0 %v933, 1
        %v942 = vpop.permute.xlu0 %941
        %943 = vrot.lane.b32.xlu0 %v934, 1
        %v944 = vpop.permute.xlu0 %943
        %945 = vrot.lane.b32.xlu0 %v935, 1
        %v946 = vpop.permute.xlu0 %945
        %947 = vrot.lane.b32.xlu0 %v936, 1
        %v948 = vpop.permute.xlu0 %947
        %vm949 = vcmask 7168
        %v950 = vsel %vm949, %v942, %v944
        %v951 = vsel %vm949, %v946, %v948
        %v958 = vadd.f32 %v806, %v942
        %v959 = vadd.f32 %v807, %v950
        %v960 = vadd.f32 %v808, %v944
        %v961 = vadd.f32 %v809, %v946
        %v962 = vadd.f32 %v810, %v951
        %v963 = vadd.f32 %v811, %v948
        %v965 = vperm.slane %v576, 0
        %v966 = vperm.slane %v576, 1
        %967 = vrot.lane.b32.xlu0 %v965, 2
        %v968 = vpop.permute.xlu0 %967
        %969 = vrot.lane.b32.xlu0 %v966, 2
        %v970 = vpop.permute.xlu0 %969
        %vm971 = vcmask 15360
        %v972 = vsel %vm971, %v968, %v970
        %v976 = vmul.f32 %v922, %v968
        %v977 = vmul.f32 %v923, %v972
        %v978 = vmul.f32 %v924, %v970
        %v979 = vmul.f32 %v925, %v968
        %v980 = vmul.f32 %v926, %v972
        %v981 = vmul.f32 %v927, %v970
        %988 = vrot.lane.b32.xlu0 %v976, 127
        %v989 = vpop.permute.xlu0 %988
        %990 = vrot.lane.b32.xlu0 %v977, 127
        %v991 = vpop.permute.xlu0 %990
        %992 = vrot.lane.b32.xlu0 %v978, 127
        %v993 = vpop.permute.xlu0 %992
        %994 = vrot.lane.b32.xlu0 %v979, 127
        %v995 = vpop.permute.xlu0 %994
        %996 = vrot.lane.b32.xlu0 %v980, 127
        %v997 = vpop.permute.xlu0 %996
        %998 = vrot.lane.b32.xlu0 %v981, 127
        %v999 = vpop.permute.xlu0 %998
        %vm1000 = vcmask 1039360
        %v1001 = vsel %vm1000, %v989, %v991
        %v1002 = vsel %vm1000, %v991, %v993
        %v1003 = vsel %vm1000, %v995, %v997
        %v1004 = vsel %vm1000, %v997, %v999
        %v1011 = vadd.f32 %v958, %v1001
        %v1012 = vadd.f32 %v959, %v1002
        %v1013 = vadd.f32 %v960, %v993
        %v1014 = vadd.f32 %v961, %v1003
        %v1015 = vadd.f32 %v962, %v1004
        %v1016 = vadd.f32 %v963, %v999
        %1018 = vset.pattern.permute.xlu0 0
        %1019 = vperm.xlu0 %1018, %v571
        %v1020 = vpop.permute.xlu0 %1019
        %1023 = vset.pattern.permute.xlu0 0
        %1024 = vperm.xlu0 %1023, %v572
        %v1025 = vpop.permute.xlu0 %1024
        %v1027 = vmul.f32 %v1011, %v1020
        %v1028 = vmul.f32 %v1012, %v1020
        %v1029 = vmul.f32 %v1013, %v1020
        %v1030 = vmul.f32 %v1014, %v1025
        %v1031 = vmul.f32 %v1015, %v1025
        %v1032 = vmul.f32 %v1016, %v1025
        %1034 = vset.pattern.permute.xlu0 0
        %1035 = vperm.xlu0 %1034, %v573
        %v1036 = vpop.permute.xlu0 %1035
        %1039 = vset.pattern.permute.xlu0 0
        %1040 = vperm.xlu0 %1039, %v574
        %v1041 = vpop.permute.xlu0 %1040
        %v1043 = vadd.f32 %v1027, %v1036
        %v1044 = vadd.f32 %v1028, %v1036
        %v1045 = vadd.f32 %v1029, %v1036
        %v1046 = vadd.f32 %v1030, %v1041
        %v1047 = vadd.f32 %v1031, %v1041
        %v1048 = vadd.f32 %v1032, %v1041
        %v1049 = vmax.f32 %v1043, 0.0
        %v1050 = vmax.f32 %v1044, 0.0
        %v1051 = vmax.f32 %v1045, 0.0
        %v1052 = vmax.f32 %v1046, 0.0
        %v1053 = vmax.f32 %v1047, 0.0
        %v1054 = vmax.f32 %v1048, 0.0
        %v1055 = vmin.f32 %v1049, 6.0
        %v1056 = vmin.f32 %v1050, 6.0
        %v1057 = vmin.f32 %v1051, 6.0
        %v1058 = vmin.f32 %v1052, 6.0
        %v1059 = vmin.f32 %v1053, 6.0
        %v1060 = vmin.f32 %v1054, 6.0
        %v1061 = vld [vmem:[%s7] sm:$0xf]
        %1068 = vrot.lane.b32.xlu0 %v1055, 127
        %v1069 = vpop.permute.xlu0 %1068
        %1070 = vrot.lane.b32.xlu0 %v1056, 127
        %v1071 = vpop.permute.xlu0 %1070
        %1072 = vrot.lane.b32.xlu0 %v1057, 127
        %v1073 = vpop.permute.xlu0 %1072
        %1074 = vrot.lane.b32.xlu0 %v1058, 127
        %v1075 = vpop.permute.xlu0 %1074
        %1076 = vrot.lane.b32.xlu0 %v1059, 127
        %v1077 = vpop.permute.xlu0 %1076
        %1078 = vrot.lane.b32.xlu0 %v1060, 127
        %v1079 = vpop.permute.xlu0 %1078
        %v1080 = vsel %vm1000, %v1069, %v1071
        %v1081 = vsel %vm1000, %v1071, %v1073
        %v1082 = vsel %vm1000, %v1075, %v1077
        %v1083 = vsel %vm1000, %v1077, %v1079
        %vm1088 = vcmask 130048
        %v1090 = vsel %vm1088, %v1061, 0
        %1092 = vmatpush.msra.mxu0 0.0
        %1093 = vmatpush.msra.mxu0 0.0
        %1094 = vmatpush.msra.mxu0 0.0
        %1095 = vmatpush.msra.mxu0 0.0
        %1096 = vmatpush.msra.mxu0 0.0
        %1097 = vmatpush.msra.mxu0 0.0
        %1098 = vmatpush.msra.mxu0 0.0
        %1099 = vmatpush.msra.mxu0 0.0
        %1100 = vmatpush.msra.mxu0 0.0
        %1101 = vmatpush.msra.mxu0 0.0
        %1102 = vmatpush.msra.mxu0 0.0
        %1103 = vmatpush.msra.mxu0 0.0
        %1104 = vmatpush.msra.mxu0 0.0
        %1105 = vmatpush.msra.mxu0 0.0
        %1106 = vmatpush.msra.mxu0 %v1082
        %1107 = vmatpush.msra.mxu0 %v1080
        %1108 = vmatmul.f32.gmra.mxu0 %v1090
        %v1109 = vpop.f32.mrf.mxu0
        %v1110 = vadd.f32 0.0, %v1109
        %1111 = vdwg.mxu0
        %1112 = vmatpush.msra.mxu0 0.0
        %1113 = vmatpush.msra.mxu0 0.0
        %1114 = vmatpush.msra.mxu0 0.0
        %1115 = vmatpush.msra.mxu0 0.0
        %1116 = vmatpush.msra.mxu0 0.0
        %1117 = vmatpush.msra.mxu0 0.0
        %1118 = vmatpush.msra.mxu0 0.0
        %1119 = vmatpush.msra.mxu0 0.0
        %1120 = vmatpush.msra.mxu0 0.0
        %1121 = vmatpush.msra.mxu0 0.0
        %1122 = vmatpush.msra.mxu0 0.0
        %1123 = vmatpush.msra.mxu0 0.0
        %1124 = vmatpush.msra.mxu0 0.0
        %1125 = vmatpush.msra.mxu0 0.0
        %1126 = vmatpush.msra.mxu0 %v1083
        %1127 = vmatpush.msra.mxu0 %v1081
        %1128 = vmatmul.f32.gmra.mxu0 %v1090
        %v1129 = vpop.f32.mrf.mxu0
        %v1130 = vadd.f32 0.0, %v1129
        %1131 = vdwg.mxu0
        %v1132 = vld [vmem:[%s8] sm:$0xf]
        %1134 = vset.pattern.permute.xlu0 0
        %1135 = vperm.xlu0 %1134, %v1132
        %v1136 = vpop.permute.xlu0 %1135
        %v1138 = vmul.f32 %v1110, %v1136
        %v1139 = vmul.f32 %v1130, %v1136
        %v1140 = vld [vmem:[%s9] sm:$0xf]
        %1142 = vset.pattern.permute.xlu0 0
        %1143 = vperm.xlu0 %1142, %v1140
        %v1144 = vpop.permute.xlu0 %1143
        %v1146 = vadd.f32 %v1138, %v1144
        %v1147 = vadd.f32 %v1139, %v1144
        %s1148 = smul.addr %s578, 4
        %s1149 = scalar_lea.vmem %s425, %s1148
        %v1150 = vld [vmem:[%s1149] sm:$0xff]
        %1152 = vst [vmem:[#allocation1] ss:$2 sm:$0xff] %v1150
        %v1153 = vld.sshfl [vmem:[#allocation1] sm:$0xff pattern:$0x75316420]
        %v1154 = vld.sshfl [vmem:[#allocation1 + $0x8] sm:$0xff pattern:$0x75316420]
        %v1157 = vadd.f32 %v1146, %v1153
        %v1158 = vadd.f32 %v1147, %v1154
        %v1161 = vrot.slane %v1158, 4
        %vm1162 = vcmask 1043456
        %v1163 = vsel %vm1162, %v1157, %v1161
        %1165 = vst [vmem:[%s420] sm:$0xff] %v1163
        %s1166 = sand.u32 %s305, 1
        %s1167 = scalar_lea.sflag [#allocation4], %s1166
        %s1168 = sand.u32 %s305, 1
        %s1169 = smul.addr %s1168, 8
        %s1170 = scalar_lea.vmem [#allocation3], %s1169
        // Predicated region
        $region73: #{tpu_custom_call.1} parent=67 // pred_check
          %p1171 = pneg %p315
        $region74: #{tpu_custom_call.1} parent=67 // pred_check_branch
          %1173 = sbr.rel (%p1171) target = $region76
        $region75: #{tpu_custom_call.1} parent=67 // pred_region
          %s1174 = smul.u32 2, %s31
          %1176 = vsyncadd %s1167, 0
          %s1177 = smul.addr %s30, 2
          %s1178 = sadd.s32 %s1174, %s1177
          %s1179 = smul.addr %s1178, 4
          %s1180 = scalar_lea.hbm %s12, %s1179
          %s1182 = sshll.u32 %s1170, 4
          %s1183 = int_to_ptr.vmem [resolvable:$true] %s1182
          %s1184 = sshll.u32 %s1180, 4
          %s1185 = int_to_ptr.hbm [resolvable:$true] %s1184
          %1187 = dma.vmem_to_hbm [thread:$0]  %s1183, 128, %s1185, %s1167
        $region76: #{tpu_custom_call.1} parent=67 // pred_fallthru
          _
      $region68: #{tpu_custom_call.1} parent=5 // pred_fallthru
        _
      %p1188 = scmp.le.s32.totalorder 2, %s21
      // Predicated region
      $region77: #{tpu_custom_call.1} parent=5 // pred_check
        %p1189 = pneg %p1188
      $region78: #{tpu_custom_call.1} parent=5 // pred_check_branch
        %1191 = sbr.rel (%p1189) target = $region80
      $region79: #{tpu_custom_call.1} parent=5 // pred_region
        %s1192 = ssub.s32 %s21, 2
        // Predicated region
        $region81: #{tpu_custom_call.1} parent=79 // pred_check
          %p1193 = pneg %p321
        $region82: #{tpu_custom_call.1} parent=79 // pred_check_branch
          %1195 = sbr.rel (%p1193) target = $region84
        $region83: #{tpu_custom_call.1} parent=79 // pred_region
          %s1196 = sand.u32 %s306, 1
          %s1197 = scalar_lea.sflag [#allocation4], %s1196
          %s1198 = sand.u32 %s306, 1
          %s1199 = smul.addr %s1198, 8
          %s1200 = scalar_lea.vmem [#allocation3], %s1199
          %1202 = dma.done %s1197, 128
        $region84: #{tpu_custom_call.1} parent=79 // pred_fallthru
          _
      $region80: #{tpu_custom_call.1} parent=5 // pred_fallthru
        _
    $region6: #{tpu_custom_call.1} parent=1 // loop_footer
      %s25 = sadd.s32 1, %s21
    $region7: #{tpu_custom_call.1} parent=1 // loop_footer_branch
      %20 = sbr.rel target = $region3
    $region8: #{tpu_custom_call.1} parent=1 // loop_exit
      _
    %1203 = vsyncpa [#allocation4], 1
    %s1204 = scalar_lea.sflag [#allocation4], 1
    %1205 = vsyncpa %s1204, 1

</llo_original>
